<compile_context>
chip_gen: v7x
topology: tpu7x:2x2x1
jax: 0.10.0
libtpu: 0.0.40
codegen_flags: <defaults>
</compile_context>

<pallas_src>
import functools
import math

import jax
import jax.numpy as jnp
from jax.experimental import pallas as pl
from jax.experimental.pallas import tpu as pltpu


# ---------------------------------------------------------------------------
# Kernel body
# ---------------------------------------------------------------------------
def _memory_kernel(x_ref, w_ref, att_ref, out_ref, *, approx_recip, mxu_dtype):
    # x_ref:   (C, Ht)   native-layout tile of the latent code (x[b, :, h0:h0+Ht])
    # w_ref:   (M, C)    full memory bank, resident every grid step
    # att_ref: (Ht, M)   softmax attention over memory slots
    # out_ref: (C, Ht)   reconstructed features, native [B, C, H] layout
    x_cols = x_ref[...]                                   # (C, Ht)
    w = w_ref[...]                                        # (M, C)
    if mxu_dtype is not None:
        x_cols = x_cols.astype(mxu_dtype)
        w = w.astype(mxu_dtype)

    # scores^T = W @ x   (canonical nn MXU form), then one f32 XLU transpose.
    s_t = jax.lax.dot_general(w, x_cols, (((1,), (0,)), ((), ())),
                              preferred_element_type=jnp.float32)   # (M, Ht)
    s = s_t.T                                                       # (Ht, M) f32

    # Numerically stable softmax over the memory dimension (f32 math).
    m = jnp.max(s, axis=-1, keepdims=True)
    e = jnp.exp(s - m)
    denom = jnp.sum(e, axis=-1, keepdims=True)
    if approx_recip:
        p = e * pl.reciprocal(denom, approx=True)         # EUP slot, ~free
    else:
        p = e / denom

    att_ref[...] = p.astype(att_ref.dtype)

    # out = att @ W  (nn form); transpose (f32, XLU) to the native [C, H] layout.
    out = jax.lax.dot_general(p.astype(w.dtype), w, (((1,), (0,)), ((), ())),
                              preferred_element_type=jnp.float32)   # (Ht, C)
    out_ref[...] = out.T.astype(out_ref.dtype)


# ---------------------------------------------------------------------------
# One-time capability probe for pl.Buffered(1) (single-buffered resident W).
# ---------------------------------------------------------------------------
def _probe_kernel(a_ref, o_ref):
    o_ref[...] = a_ref[...] + 1.0


@functools.lru_cache(maxsize=None)
def _single_buffer_supported():
    try:
        spec = pl.BlockSpec((8, 128), lambda i: (0, 0),
                            pipeline_mode=pl.Buffered(1))
    except Exception:
        return False
    try:
        fn = pl.pallas_call(
            _probe_kernel,
            out_shape=jax.ShapeDtypeStruct((8, 128), jnp.float32),
            grid=(2,),
            in_specs=[spec],
            out_specs=pl.BlockSpec((8, 128), lambda i: (0, 0)))
        pl.lower_as_mlir(fn, jnp.zeros((8, 128), jnp.float32))
        return True
    except Exception:
        return False


# ---------------------------------------------------------------------------
# Wrapper
# ---------------------------------------------------------------------------
def memory_module_forward(x, weight, *, att_dtype=None, mxu_dtype=None,
                          max_h_tile=1024, approx_reciprocal=True):
    """x: [B, C, H], weight: [mem_dim, fea_dim=C].

    Returns (att_weight [B*H, mem_dim], output [B, C, H]) — the PyTorch
    MemoryModule.forward semantics.  shrink_thres / args are unused in the
    PyTorch forward and therefore not modeled here.
    """
    B, C, H = x.shape
    M, Cw = weight.shape
    assert C == Cw, "fea_dim mismatch"

    att_dtype = jnp.dtype(att_dtype) if att_dtype is not None else jnp.dtype(x.dtype)
    xb = jnp.dtype(x.dtype).itemsize
    wb = jnp.dtype(weight.dtype).itemsize
    ab = att_dtype.itemsize

    single_w = _single_buffer_supported()
    w_bufs = 1 if single_w else 2

    # Generation-aware VMEM budget (128 MiB on v5e/v6e, 64 MiB on v7x).
    vmem_cap = 64 << 20                       # conservative default (v7x-safe)
    try:
        info = pltpu.get_tpu_info()
        vmem_cap = int(getattr(info, "vmem_capacity_bytes", vmem_cap))
    except Exception:
        pass
    budget = int(vmem_cap * 0.70)

    def footprint(ht):
        io = 2 * C * ht * xb + 2 * C * ht * xb        # x tiles + out tiles (2-buffered)
        att = 2 * ht * M * ab                          # att tiles (2-buffered)
        wmem = w_bufs * M * C * wb                     # resident memory bank
        tmp = 4 * ht * M * 4 + 2 * ht * C * 4          # f32 intermediates headroom
        return io + att + wmem + tmp

    # Candidate H tiles: multiples of 128 that divide H exactly, plus full H
    # (full-extent blocks are exempt from the (8,128) rule -> no padding ever).
    cands = {H}
    t = 128
    while t < H:
        if H % t == 0:
            cands.add(t)
        t += 128
    cands = sorted(cands)
    if max_h_tile is not None:
        capped = [c for c in cands if c <= max_h_tile]
        cands = capped or cands[:1]

    fitting = [c for c in cands if footprint(c) <= budget] or [cands[0]]
    # Keep both v7x TensorCores busy: prefer tiles giving >= 2 parallel steps.
    multi = [c for c in fitting if B * (H // c) >= 2]
    ht = max(multi or fitting)
    grid = (B, H // ht)

    vmem_limit = int(min(vmem_cap * 0.9,
                         max(32 << 20, footprint(ht) * 1.3 + (4 << 20))))

    kernel = functools.partial(_memory_kernel,
                               approx_recip=approx_reciprocal,
                               mxu_dtype=mxu_dtype)

    w_spec_kwargs = {}
    if single_w:
        # Constant index_map -> one buffer suffices; halves W's VMEM use.
        w_spec_kwargs["pipeline_mode"] = pl.Buffered(1)
    w_spec = pl.BlockSpec((M, C), lambda b, j: (0, 0), **w_spec_kwargs)

    cost = pl.CostEstimate(
        flops=int(4 * B * H * M * C),                       # two matmuls
        transcendentals=int(B * H * M),                     # exp
        bytes_accessed=int(B * H * C * xb + M * C * wb
                           + B * H * M * ab + B * H * C * xb))

    att_bhm, out = pl.pallas_call(
        kernel,
        out_shape=(jax.ShapeDtypeStruct((B, H, M), att_dtype),
                   jax.ShapeDtypeStruct((B, C, H), x.dtype)),
        grid=grid,
        in_specs=[pl.BlockSpec((None, C, ht), lambda b, j: (b, 0, j)),   # x tile
                  w_spec],                                               # memory bank
        out_specs=(pl.BlockSpec((None, ht, M), lambda b, j: (b, j, 0)),  # att
                   pl.BlockSpec((None, C, ht), lambda b, j: (b, 0, j))), # out
        compiler_params=pltpu.CompilerParams(
            dimension_semantics=("parallel", "parallel"),
            vmem_limit_bytes=vmem_limit),
        cost_estimate=cost,
    )(x, weight)

    # [B, H, M] -> [B*H, M] is a free (contiguous) reshape; out is already [B, C, H].
    return att_bhm.reshape(B * H, M), out


def init_memory_weight(key, mem_dim, fea_dim, dtype=jnp.float32):
    """Matches reset_parameters(): uniform(-stdv, stdv), stdv = 1/sqrt(fea_dim)."""
    stdv = 1.0 / math.sqrt(fea_dim)
    return jax.random.uniform(key, (mem_dim, fea_dim), dtype=dtype,
                              minval=-stdv, maxval=stdv)


def _reference(x, weight):
    B, C, H = x.shape
    xf = jnp.transpose(x, (0, 2, 1)).reshape(B * H, C)
    att = jax.nn.softmax(xf @ weight.T, axis=1)
    out = att @ weight
    return att, jnp.transpose(out.reshape(B, H, C), (0, 2, 1))


if __name__ == "__main__":
    key = jax.random.PRNGKey(0)

    # Config 1: odd / unaligned shapes (C=32, H=13, mem_dim=100) -> full-H tile.
    # Config 2: H=256 with a 128-row H tile -> tiled-H path, (2, 2) parallel grid.
    configs = [
        dict(B=2, C=32, H=13, mem_dim=100, max_h_tile=1024),
        dict(B=2, C=64, H=256, mem_dim=160, max_h_tile=128),
    ]
    for cfg in configs:
        key, kx, kw = jax.random.split(key, 3)
        B, C, H, M = cfg["B"], cfg["C"], cfg["H"], cfg["mem_dim"]
        x = jax.random.normal(kx, (B, C, H), dtype=jnp.float32)
        weight = init_memory_weight(kw, M, C)

        att, out = memory_module_forward(x, weight, max_h_tile=cfg["max_h_tile"])
        jax.block_until_ready((att, out))

        att_ref, out_ref = _reference(x, weight)
        assert att.shape == (B * H, M) and out.shape == (B, C, H)
        # Tolerance loosened slightly for the EUP approx reciprocal in the softmax.
        assert jnp.allclose(att, att_ref, atol=2e-3, rtol=2e-2), "att mismatch"
        assert jnp.allclose(out, out_ref, atol=2e-3, rtol=2e-2), "out mismatch"

    print("KERNEL_OK")
</pallas_src>

<mosaic_0001>
module attributes {stable_mosaic.version = 11 : i64} {
  func.func @_memory_kernel(%arg0: i32, %arg1: i32, %arg2: memref<1x32x13xf32, #tpu.memory_space<vmem>>, %arg3: memref<100x32xf32, #tpu.memory_space<vmem>>, %arg4: memref<1x13x100xf32, #tpu.memory_space<vmem>>, %arg5: memref<1x32x13xf32, #tpu.memory_space<vmem>>) attributes {dimension_semantics = [#tpu.dimension_semantics<parallel>, #tpu.dimension_semantics<parallel>], iteration_bounds = array<i64: 2, 1>, scalar_prefetch = 0 : i64, scratch_operands = 0 : i64, tpu.core_type = #tpu.core_type<tc>, window_params = [{transform_indices = @transform_0, window_bounds = array<i64: 1, 32, 13>}, {pipeline_mode = #tpu.pipeline_mode<synchronous>, transform_indices = @transform_1, window_bounds = array<i64: 100, 32>}, {transform_indices = @transform_2, window_bounds = array<i64: 1, 13, 100>}, {transform_indices = @transform_3, window_bounds = array<i64: 1, 32, 13>}]} {
    %c0 = arith.constant 0 : index
    %c0_0 = arith.constant 0 : index
    %c0_1 = arith.constant 0 : index
    %0 = vector.load %arg2[%c0, %c0_0, %c0_1] : memref<1x32x13xf32, #tpu.memory_space<vmem>>, vector<1x32x13xf32>
    %1 = vector.shape_cast %0 : vector<1x32x13xf32> to vector<32x13xf32>
    %c0_2 = arith.constant 0 : index
    %c0_3 = arith.constant 0 : index
    %2 = vector.load %arg3[%c0_2, %c0_3] : memref<100x32xf32, #tpu.memory_space<vmem>>, vector<100x32xf32>
    %cst = arith.constant dense<0.000000e+00> : vector<100x13xf32>
    %3 = tpu.matmul %2, %1, %cst {dimension_numbers = #tpu.dot_dimension_numbers<[1], [0], [0], [1], [0, 0, 1, 1], [], []>} : vector<100x32xf32>, vector<32x13xf32>, vector<100x13xf32> -> vector<100x13xf32>
    %4 = tpu.transpose %3, [1, 0] : vector<100x13xf32> -> vector<13x100xf32>
    %cst_4 = arith.constant dense<0xFF800000> : vector<13xf32>
    %5 = vector.multi_reduction <maximumf>, %4, %cst_4 [1] : vector<13x100xf32> to vector<13xf32>
    %6 = vector.shape_cast %5 : vector<13xf32> to vector<13x1xf32>
    %7 = vector.broadcast %6 : vector<13x1xf32> to vector<13x100xf32>
    %8 = arith.subf %4, %7 : vector<13x100xf32>
    %9 = math.exp %8 : vector<13x100xf32>
    %cst_5 = arith.constant dense<0.000000e+00> : vector<13xf32>
    %10 = vector.multi_reduction <add>, %9, %cst_5 [1] : vector<13x100xf32> to vector<13xf32>
    %11 = vector.shape_cast %10 : vector<13xf32> to vector<13x1xf32>
    %12 = tpu.reciprocal %11 {approx = true} : vector<13x1xf32> -> vector<13x1xf32>
    %13 = vector.broadcast %12 : vector<13x1xf32> to vector<13x100xf32>
    %14 = arith.mulf %9, %13 : vector<13x100xf32>
    %c0_6 = arith.constant 0 : index
    %c0_7 = arith.constant 0 : index
    %c0_8 = arith.constant 0 : index
    %15 = vector.load %arg4[%c0_6, %c0_7, %c0_8] : memref<1x13x100xf32, #tpu.memory_space<vmem>>, vector<1x13x100xf32>
    %16 = vector.shape_cast %15 : vector<1x13x100xf32> to vector<13x100xf32>
    %17 = vector.shape_cast %14 : vector<13x100xf32> to vector<1x13x100xf32>
    tpu.vector_store %arg4[%c0_6, %c0_7, %c0_8], %17 {strides = array<i32>} : memref<1x13x100xf32, #tpu.memory_space<vmem>>, vector<1x13x100xf32>,
    %cst_9 = arith.constant dense<0.000000e+00> : vector<13x32xf32>
    %18 = tpu.matmul %14, %2, %cst_9 {dimension_numbers = #tpu.dot_dimension_numbers<[1], [0], [0], [1], [0, 0, 1, 1], [], []>} : vector<13x100xf32>, vector<100x32xf32>, vector<13x32xf32> -> vector<13x32xf32>
    %19 = tpu.transpose %18, [1, 0] : vector<13x32xf32> -> vector<32x13xf32>
    %c0_10 = arith.constant 0 : index
    %c0_11 = arith.constant 0 : index
    %c0_12 = arith.constant 0 : index
    %20 = vector.load %arg5[%c0_10, %c0_11, %c0_12] : memref<1x32x13xf32, #tpu.memory_space<vmem>>, vector<1x32x13xf32>
    %21 = vector.shape_cast %20 : vector<1x32x13xf32> to vector<32x13xf32>
    %22 = vector.shape_cast %19 : vector<32x13xf32> to vector<1x32x13xf32>
    tpu.vector_store %arg5[%c0_10, %c0_11, %c0_12], %22 {strides = array<i32>} : memref<1x32x13xf32, #tpu.memory_space<vmem>>, vector<1x32x13xf32>,
    return
  }
  func.func @transform_0(%arg0: i32, %arg1: i32) -> (i32, i32, i32) {
    %c0_i32 = arith.constant 0 : i32
    %c0_i32_0 = arith.constant 0 : i32
    return %arg0, %c0_i32, %arg1 : i32, i32, i32
  }
  func.func @transform_1(%arg0: i32, %arg1: i32) -> (i32, i32) {
    %c0_i32 = arith.constant 0 : i32
    %c0_i32_0 = arith.constant 0 : i32
    %c0_i32_1 = arith.constant 0 : i32
    return %c0_i32, %c0_i32_0 : i32, i32
  }
  func.func @transform_2(%arg0: i32, %arg1: i32) -> (i32, i32, i32) {
    %c0_i32 = arith.constant 0 : i32
    %c0_i32_0 = arith.constant 0 : i32
    return %arg0, %arg1, %c0_i32 : i32, i32, i32
  }
  func.func @transform_3(%arg0: i32, %arg1: i32) -> (i32, i32, i32) {
    %c0_i32 = arith.constant 0 : i32
    %c0_i32_0 = arith.constant 0 : i32
    return %arg0, %c0_i32, %arg1 : i32, i32, i32
  }
}

</mosaic_0001>

<llo_original>
// kernel: tpu_custom_call.1
$region0: #{tpu_custom_call.1}
  #allocation0 [shape = 'u32[]', space=smem, size = 0x4, offset = 0x4, fixed_abs, tag = 'smem constant byte address 0x4 - core index']
  #allocation1 [shape = 'u32[144,128]{1,0:T(1,128)}', space=vmem, size = 0x12000, scoped, tag = 'internal scratch']
  %s0 = inlined_call_operand.vmem [shape: f32[2,32,13], index: 0, kind: input, shape index: {}]
  %s1 = inlined_call_operand.vmem [shape: f32[100,32], index: 1, kind: input, shape index: {}]
  %s2 = inlined_call_operand.vmem [shape: f32[2,13,100], index: 2, kind: output, shape index: {0}]
  %s3 = inlined_call_operand.vmem [shape: f32[2,32,13], index: 3, kind: output, shape index: {1}]
  %4 = xla_tuple %s2, %s3
  %s5 = sld [smem:[#allocation0]]
  $region49: #{tpu_custom_call.1} parent=0
    _
  %s7 = ssub.s32 1, %s5
  %s8 = scalar_select 0, %s7, %s5
  loop: start=0, step=1, limit=4
  $region2: #{tpu_custom_call.1} parent=0 // loop_pre_header
    _
  $region3: #{tpu_custom_call.1} parent=0 // loop_header
    %s10 = sphi 0, %s14
    %p11 = scmp.ge.s32.totalorder %s10, 4
    %s17 = sphi 0, %s29
    %s18 = sphi 0, %s25
    %s19 = sphi 0, %s17
    %s20 = sphi 0, %s18
    %s21 = sphi 0, %s19
    %s22 = sphi 0, %s20
    %s34 = sphi 0, %s36
    %s37 = sphi 0, %s34
    %s38 = sphi 0, %s37
    %s54 = sphi 0, %s38
    %s58 = sphi 0, %s58
    %s60 = sphi 0, %s58
    %s61 = sphi 0, %s60
    %s75 = sphi 0, %s61
    %s83 = sphi 0, %s85
    %s86 = sphi 0, %s83
    %s87 = sphi 0, %s86
    %s103 = sphi 0, %s87
    %s111 = sphi 0, %s113
    %s114 = sphi 0, %s111
    %s115 = sphi 0, %s114
    %s131 = sphi 0, %s115
  $region4: #{tpu_custom_call.1} parent=0 // loop_header_branch
    %13 = sbr.rel (%p11) target = $region8
  $region5: #{tpu_custom_call.1} parent=0 // loop_body
    %s15 = ssub.s32 %s10, 1
    %s16 = ssub.s32 %s10, 2
    %s23 = sadd.s32 1, %s18
    %p24 = scmp.ge.s32.totalorder %s23, 1
    %s25 = scalar_select %p24, 0, %s23
    %s26 = sadd.s32 1, %s17
    %s27 = scalar_select %p24, %s26, %s17
    %p28 = scmp.ge.s32.totalorder %s27, 2
    %s29 = scalar_select %p28, 0, %s27
    %s30 = ssub.s32 %s17, %s29
    %s31 = ssub.s32 %s18, %s25
    %s32 = sor.u32 %s30, %s31
    %p33 = scmp.eq.s32.totalorder %s32, 0
    %s35 = sadd.s32 %s34, 1
    %s36 = scalar_select %p33, %s34, %s35
    %p39 = pneg %p33
    %p40 = scmp.eq.s32.totalorder %s10, 1
    %p41 = por %p39, %p40
    %p42 = scmp.ne.s32.totalorder %s34, %s37
    %p43 = scmp.eq.s32.totalorder %s10, 0
    %p44 = por %p42, %p43
    %p45 = scmp.ne.s32.totalorder %s34, %s37
    %p46 = scmp.eq.s32.totalorder %s15, 1
    %p47 = por %p45, %p46
    %p48 = scmp.ne.s32.totalorder %s37, %s38
    %p49 = scmp.eq.s32.totalorder %s15, 0
    %p50 = por %p48, %p49
    %p51 = scmp.ne.s32.totalorder %s37, %s38
    %p52 = scmp.eq.s32.totalorder %s16, 1
    %p53 = por %p51, %p52
    %p55 = scmp.ne.s32.totalorder %s38, %s54
    %p56 = scmp.eq.s32.totalorder %s16, 0
    %p57 = por %p55, %p56
    %s59 = sadd.s32 %s58, 1
    %p62 = scmp.eq.s32.totalorder %s10, 1
    %p63 = scmp.ne.s32.totalorder %s58, %s60
    %p64 = scmp.eq.s32.totalorder %s10, 0
    %p65 = por %p63, %p64
    %p66 = scmp.ne.s32.totalorder %s58, %s60
    %p67 = scmp.eq.s32.totalorder %s15, 1
    %p68 = por %p66, %p67
    %p69 = scmp.ne.s32.totalorder %s60, %s61
    %p70 = scmp.eq.s32.totalorder %s15, 0
    %p71 = por %p69, %p70
    %p72 = scmp.ne.s32.totalorder %s60, %s61
    %p73 = scmp.eq.s32.totalorder %s16, 1
    %p74 = por %p72, %p73
    %p76 = scmp.ne.s32.totalorder %s61, %s75
    %p77 = scmp.eq.s32.totalorder %s16, 0
    %p78 = por %p76, %p77
    %s79 = ssub.s32 %s17, %s29
    %s80 = ssub.s32 %s18, %s25
    %s81 = sor.u32 %s79, %s80
    %p82 = scmp.eq.s32.totalorder %s81, 0
    %s84 = sadd.s32 %s83, 1
    %s85 = scalar_select %p82, %s83, %s84
    %p88 = pneg %p82
    %p89 = scmp.eq.s32.totalorder %s10, 1
    %p90 = por %p88, %p89
    %p91 = scmp.ne.s32.totalorder %s83, %s86
    %p92 = scmp.eq.s32.totalorder %s10, 0
    %p93 = por %p91, %p92
    %p94 = scmp.ne.s32.totalorder %s83, %s86
    %p95 = scmp.eq.s32.totalorder %s15, 1
    %p96 = por %p94, %p95
    %p97 = scmp.ne.s32.totalorder %s86, %s87
    %p98 = scmp.eq.s32.totalorder %s15, 0
    %p99 = por %p97, %p98
    %p100 = scmp.ne.s32.totalorder %s86, %s87
    %p101 = scmp.eq.s32.totalorder %s16, 1
    %p102 = por %p100, %p101
    %p104 = scmp.ne.s32.totalorder %s87, %s103
    %p105 = scmp.eq.s32.totalorder %s16, 0
    %p106 = por %p104, %p105
    %s107 = ssub.s32 %s17, %s29
    %s108 = ssub.s32 %s18, %s25
    %s109 = sor.u32 %s107, %s108
    %p110 = scmp.eq.s32.totalorder %s109, 0
    %s112 = sadd.s32 %s111, 1
    %s113 = scalar_select %p110, %s111, %s112
    %p116 = pneg %p110
    %p117 = scmp.eq.s32.totalorder %s10, 1
    %p118 = por %p116, %p117
    %p119 = scmp.ne.s32.totalorder %s111, %s114
    %p120 = scmp.eq.s32.totalorder %s10, 0
    %p121 = por %p119, %p120
    %p122 = scmp.ne.s32.totalorder %s111, %s114
    %p123 = scmp.eq.s32.totalorder %s15, 1
    %p124 = por %p122, %p123
    %p125 = scmp.ne.s32.totalorder %s114, %s115
    %p126 = scmp.eq.s32.totalorder %s15, 0
    %p127 = por %p125, %p126
    %p128 = scmp.ne.s32.totalorder %s114, %s115
    %p129 = scmp.eq.s32.totalorder %s16, 1
    %p130 = por %p128, %p129
    %p132 = scmp.ne.s32.totalorder %s115, %s131
    %p133 = scmp.eq.s32.totalorder %s16, 0
    %p134 = por %p132, %p133
    %p135 = scmp.le.s32.totalorder 1, %s10
    %p136 = scmp.lt.s32.totalorder %s10, 3
    %p137 = pnand %p135, %p136
    %p138 = pneg %p137
    // Predicated region
    $region9: #{tpu_custom_call.1} parent=5 // pred_check
      _
    $region10: #{tpu_custom_call.1} parent=5 // pred_check_branch
      %140 = sbr.rel (%p137) target = $region12
    $region11: #{tpu_custom_call.1} parent=5 // pred_region
      %s141 = ssub.s32 %s10, 1
      // Predicated region
      $region13: #{tpu_custom_call.1} parent=11 // pred_check
        %p142 = pneg %p71
      $region14: #{tpu_custom_call.1} parent=11 // pred_check_branch
        %144 = sbr.rel (%p142) target = $region16
      $region15: #{tpu_custom_call.1} parent=11 // pred_region
        _
      $region16: #{tpu_custom_call.1} parent=11 // pred_fallthru
        _
    $region12: #{tpu_custom_call.1} parent=5 // pred_fallthru
      _
    %p145 = scmp.lt.s32.totalorder %s10, 2
    // Predicated region
    $region17: #{tpu_custom_call.1} parent=5 // pred_check
      %p146 = pneg %p145
    $region18: #{tpu_custom_call.1} parent=5 // pred_check_branch
      %148 = sbr.rel (%p146) target = $region20
    $region19: #{tpu_custom_call.1} parent=5 // pred_region
      // Predicated region
      $region21: #{tpu_custom_call.1} parent=19 // pred_check
        %p149 = pneg %p44
      $region22: #{tpu_custom_call.1} parent=19 // pred_check_branch
        %151 = sbr.rel (%p149) target = $region24
      $region23: #{tpu_custom_call.1} parent=19 // pred_region
        %p152 = scmp.lt.s32.totalorder %s17, 1
        %s153 = scalar_select %p152, %s17, 1
        %p154 = scmp.lt.s32.totalorder %s18, 0
        %s155 = scalar_select %p154, %s18, 0
        %s156 = smul.addr %s153, 4
        %s157 = sadd.s32 %s155, %s156
        %s158 = smul.addr %s157, 8
        %s159 = scalar_lea.vmem %s0, %s158
      $region24: #{tpu_custom_call.1} parent=19 // pred_fallthru
        _
    $region20: #{tpu_custom_call.1} parent=5 // pred_fallthru
      _
    %p160 = scmp.le.s32.totalorder 1, %s10
    %p161 = scmp.lt.s32.totalorder %s10, 3
    %p162 = pnand %p160, %p161
    %p163 = pneg %p162
    // Predicated region
    $region25: #{tpu_custom_call.1} parent=5 // pred_check
      _
    $region26: #{tpu_custom_call.1} parent=5 // pred_check_branch
      %165 = sbr.rel (%p162) target = $region28
    $region27: #{tpu_custom_call.1} parent=5 // pred_region
      %s166 = ssub.s32 %s10, 1
      %p167 = scmp.lt.s32.totalorder %s19, 1
      %s168 = scalar_select %p167, %s19, 1
      %p169 = scmp.lt.s32.totalorder %s20, 0
      %s170 = scalar_select %p169, %s20, 0
      %s171 = smul.addr %s168, 4
      %s172 = sadd.s32 %s170, %s171
      %s173 = smul.addr %s172, 8
      %s174 = scalar_lea.vmem %s0, %s173
      %p175 = pneg %p50
      %p176 = pneg %p47
      %p177 = pneg %p71
      %p178 = pneg %p68
      %p179 = pneg %p99
      %p180 = pneg %p96
      %s181 = smul.u32 2, %s20
      %p182 = scmp.lt.s32.totalorder %s19, 1
      %s183 = scalar_select %p182, %s19, 1
      %p184 = scmp.lt.s32.totalorder %s181, 1
      %s185 = scalar_select %p184, %s181, 1
      %s186 = smul.addr %s183, 2
      %s187 = sadd.s32 %s185, %s186
      %s188 = smul.addr %s187, 8
      %s189 = scalar_lea.vmem %s2, %s188
      %p190 = pneg %p127
      %p191 = pneg %p124
      %p192 = scmp.lt.s32.totalorder %s19, 1
      %s193 = scalar_select %p192, %s19, 1
      %p194 = scmp.lt.s32.totalorder %s20, 0
      %s195 = scalar_select %p194, %s20, 0
      %s196 = smul.addr %s193, 4
      %s197 = sadd.s32 %s195, %s196
      %s198 = smul.addr %s197, 8
      %s199 = scalar_lea.vmem %s3, %s198
      %p200 = scmp.lt.s32.totalorder %s19, 1
      %s201 = scalar_select %p200, %s19, 1
      %p202 = scmp.lt.s32.totalorder %s20, 0
      %s203 = scalar_select %p202, %s20, 0
      %s204 = smul.addr %s201, 4
      %s205 = sadd.s32 %s203, %s204
      %s206 = smul.addr %s205, 8
      %s207 = scalar_lea.vmem %s0, %s206
      %s208 = smul.u32 2, %s20
      %p209 = scmp.lt.s32.totalorder %s19, 1
      %s210 = scalar_select %p209, %s19, 1
      %p211 = scmp.lt.s32.totalorder %s208, 1
      %s212 = scalar_select %p211, %s208, 1
      %s213 = smul.addr %s210, 2
      %s214 = sadd.s32 %s212, %s213
      %s215 = smul.addr %s214, 8
      %s216 = scalar_lea.vmem %s2, %s215
      %s217 = smul.u32 2, %s20
      %p218 = scmp.lt.s32.totalorder %s19, 1
      %s219 = scalar_select %p218, %s19, 1
      %p220 = scmp.lt.s32.totalorder %s20, 0
      %s221 = scalar_select %p220, %s20, 0
      %s222 = smul.addr %s219, 4
      %s223 = sadd.s32 %s221, %s222
      %s224 = smul.addr %s223, 8
      %s225 = scalar_lea.vmem %s3, %s224
      %v226 = vld [vmem:[%s207] sm:$0xff]
      %v227 = vld [vmem:[%s207 + $0x8] sm:$0xff]
      %v228 = vld [vmem:[%s207 + $0x10] sm:$0xff]
      %v229 = vld [vmem:[%s207 + $0x18] sm:$0xff]
      %v230 = vld [vmem:[%s1] sm:$0xff]
      %v231 = vld [vmem:[%s1 + $0x8] sm:$0xff]
      %v232 = vld [vmem:[%s1 + $0x10] sm:$0xff]
      %v233 = vld [vmem:[%s1 + $0x18] sm:$0xff]
      %v234 = vld [vmem:[%s1 + $0x20] sm:$0xff]
      %v235 = vld [vmem:[%s1 + $0x28] sm:$0xff]
      %v236 = vld [vmem:[%s1 + $0x30] sm:$0xff]
      %v237 = vld [vmem:[%s1 + $0x38] sm:$0xff]
      %v238 = vld [vmem:[%s1 + $0x40] sm:$0xff]
      %v239 = vld [vmem:[%s1 + $0x48] sm:$0xff]
      %v240 = vld [vmem:[%s1 + $0x50] sm:$0xff]
      %v241 = vld [vmem:[%s1 + $0x58] sm:$0xff]
      %v242 = vld [vmem:[%s1 + $0x60] sm:$0xf]
      %vm243 = vcmask 261120
      %v245 = vsel %vm243, %v230, 0
      %v248 = vsel %vm243, %v231, 0
      %v251 = vsel %vm243, %v232, 0
      %v254 = vsel %vm243, %v233, 0
      %v257 = vsel %vm243, %v234, 0
      %v260 = vsel %vm243, %v235, 0
      %v263 = vsel %vm243, %v236, 0
      %v266 = vsel %vm243, %v237, 0
      %v269 = vsel %vm243, %v238, 0
      %v272 = vsel %vm243, %v239, 0
      %v275 = vsel %vm243, %v240, 0
      %v278 = vsel %vm243, %v241, 0
      %v281 = vsel %vm243, %v242, 0
      %283 = vmatprep.subr.mxu0 0.0
      %284 = vmatpush1.msra.mxu0 %v226
      %285 = vmatprep.subr.mxu0 0.0
      %286 = vmatpush1.msra.mxu0 %v227
      %287 = vmatprep.subr.mxu0 0.0
      %288 = vmatpush1.msra.mxu0 %v228
      %289 = vmatprep.subr.mxu0 0.0
      %290 = vmatpush1.msra.mxu0 %v229
      %291 = vmatprep.subr.mxu0 0.0
      %292 = vmatpush1.msra.mxu0 0.0
      %293 = vmatprep.subr.mxu0 0.0
      %294 = vmatpush1.msra.mxu0 0.0
      %295 = vmatprep.subr.mxu0 0.0
      %296 = vmatpush1.msra.mxu0 0.0
      %297 = vmatprep.subr.mxu0 0.0
      %298 = vmatpush1.msra.mxu0 0.0
      %299 = vmatprep.subr.mxu0 0.0
      %300 = vmatpush1.msra.mxu0 0.0
      %301 = vmatprep.subr.mxu0 0.0
      %302 = vmatpush1.msra.mxu0 0.0
      %303 = vmatprep.subr.mxu0 0.0
      %304 = vmatpush1.msra.mxu0 0.0
      %305 = vmatprep.subr.mxu0 0.0
      %306 = vmatpush1.msra.mxu0 0.0
      %307 = vmatprep.subr.mxu0 0.0
      %308 = vmatpush1.msra.mxu0 0.0
      %309 = vmatprep.subr.mxu0 0.0
      %310 = vmatpush1.msra.mxu0 0.0
      %311 = vmatprep.subr.mxu0 0.0
      %312 = vmatpush1.msra.mxu0 0.0
      %313 = vmatprep.subr.mxu0 0.0
      %314 = vmatpush1.msra.mxu0 0.0
      %315 = vmatprep.subr.mxu0 0.0
      %316 = vmatpush1.msra.mxu0 0.0
      %317 = vmatprep.subr.mxu0 0.0
      %318 = vmatpush1.msra.mxu0 0.0
      %319 = vmatprep.subr.mxu0 0.0
      %320 = vmatpush1.msra.mxu0 0.0
      %321 = vmatprep.subr.mxu0 0.0
      %322 = vmatpush1.msra.mxu0 0.0
      %323 = vmatprep.subr.mxu0 0.0
      %324 = vmatpush1.msra.mxu0 0.0
      %325 = vmatprep.subr.mxu0 0.0
      %326 = vmatpush1.msra.mxu0 0.0
      %327 = vmatprep.subr.mxu0 0.0
      %328 = vmatpush1.msra.mxu0 0.0
      %329 = vmatprep.subr.mxu0 0.0
      %330 = vmatpush1.msra.mxu0 0.0
      %331 = vmatprep.subr.mxu0 0.0
      %332 = vmatpush1.msra.mxu0 0.0
      %333 = vmatprep.subr.mxu0 0.0
      %334 = vmatpush1.msra.mxu0 0.0
      %335 = vmatprep.subr.mxu0 0.0
      %336 = vmatpush1.msra.mxu0 0.0
      %337 = vmatprep.subr.mxu0 0.0
      %338 = vmatpush1.msra.mxu0 0.0
      %339 = vmatprep.subr.mxu0 0.0
      %340 = vmatpush1.msra.mxu0 0.0
      %341 = vmatprep.subr.mxu0 0.0
      %342 = vmatpush1.msra.mxu0 0.0
      %343 = vmatprep.subr.mxu0 0.0
      %344 = vmatpush1.msra.mxu0 0.0
      %345 = vmatprep.subr.mxu0 0.0
      %346 = vmatpush1.msra.mxu0 0.0
      %347 = vmatprep.mubr.f32.mxu0 0.0
      %348 = vmatmul.mubr.f32.gmra.mrb[0].mxu0 %v245
      %v349 = vpop.f32.mrb[0].mxu0
      %v350 = vadd.f32 0.0, %v349
      %v351 = vpop.f32.mrb[0].mxu0
      %352 = vmatprep.mubr.f32.mxu0 0.0
      %353 = vmatmul.mubr.f32.gmra.mrb[0].mxu0 %v248
      %v354 = vpop.f32.mrb[0].mxu0
      %v355 = vadd.f32 0.0, %v354
      %v356 = vpop.f32.mrb[0].mxu0
      %357 = vmatprep.mubr.f32.mxu0 0.0
      %358 = vmatmul.mubr.f32.gmra.mrb[0].mxu0 %v251
      %v359 = vpop.f32.mrb[0].mxu0
      %v360 = vadd.f32 0.0, %v359
      %v361 = vpop.f32.mrb[0].mxu0
      %362 = vmatprep.mubr.f32.mxu0 0.0
      %363 = vmatmul.mubr.f32.gmra.mrb[0].mxu0 %v254
      %v364 = vpop.f32.mrb[0].mxu0
      %v365 = vadd.f32 0.0, %v364
      %v366 = vpop.f32.mrb[0].mxu0
      %367 = vmatprep.mubr.f32.mxu0 0.0
      %368 = vmatmul.mubr.f32.gmra.mrb[0].mxu0 %v257
      %v369 = vpop.f32.mrb[0].mxu0
      %v370 = vadd.f32 0.0, %v369
      %v371 = vpop.f32.mrb[0].mxu0
      %372 = vmatprep.mubr.f32.mxu0 0.0
      %373 = vmatmul.mubr.f32.gmra.mrb[0].mxu0 %v260
      %v374 = vpop.f32.mrb[0].mxu0
      %v375 = vadd.f32 0.0, %v374
      %v376 = vpop.f32.mrb[0].mxu0
      %377 = vmatprep.mubr.f32.mxu0 0.0
      %378 = vmatmul.mubr.f32.gmra.mrb[0].mxu0 %v263
      %v379 = vpop.f32.mrb[0].mxu0
      %v380 = vadd.f32 0.0, %v379
      %v381 = vpop.f32.mrb[0].mxu0
      %382 = vmatprep.mubr.f32.mxu0 0.0
      %383 = vmatmul.mubr.f32.gmra.mrb[0].mxu0 %v266
      %v384 = vpop.f32.mrb[0].mxu0
      %v385 = vadd.f32 0.0, %v384
      %v386 = vpop.f32.mrb[0].mxu0
      %387 = vmatprep.mubr.f32.mxu0 0.0
      %388 = vmatmul.mubr.f32.gmra.mrb[0].mxu0 %v269
      %v389 = vpop.f32.mrb[0].mxu0
      %v390 = vadd.f32 0.0, %v389
      %v391 = vpop.f32.mrb[0].mxu0
      %392 = vmatprep.mubr.f32.mxu0 0.0
      %393 = vmatmul.mubr.f32.gmra.mrb[0].mxu0 %v272
      %v394 = vpop.f32.mrb[0].mxu0
      %v395 = vadd.f32 0.0, %v394
      %v396 = vpop.f32.mrb[0].mxu0
      %397 = vmatprep.mubr.f32.mxu0 0.0
      %398 = vmatmul.mubr.f32.gmra.mrb[0].mxu0 %v275
      %v399 = vpop.f32.mrb[0].mxu0
      %v400 = vadd.f32 0.0, %v399
      %v401 = vpop.f32.mrb[0].mxu0
      %402 = vmatprep.mubr.f32.mxu0 0.0
      %403 = vmatmul.mubr.f32.gmra.mrb[0].mxu0 %v278
      %v404 = vpop.f32.mrb[0].mxu0
      %v405 = vadd.f32 0.0, %v404
      %v406 = vpop.f32.mrb[0].mxu0
      %407 = vmatprep.mubr.f32.mxu0 0.0
      %408 = vmatmul.mubr.f32.gmra.mrb[0].mxu0 %v281
      %v409 = vpop.f32.mrb[0].mxu0
      %v410 = vadd.f32 0.0, %v409
      %v411 = vpop.f32.mrb[0].mxu0
      %412 = vdwg.mxu0
      %413 = vxpose.xlu0.b32.start [1/16] %v350, 128
      %414 = vxpose.xlu0.b32.cont [2/16] %v355, 128
      %415 = vxpose.xlu0.b32.cont [3/16] %v360, 128
      %416 = vxpose.xlu0.b32.cont [4/16] %v365, 128
      %417 = vxpose.xlu0.b32.cont [5/16] %v370, 128
      %418 = vxpose.xlu0.b32.cont [6/16] %v375, 128
      %419 = vxpose.xlu0.b32.cont [7/16] %v380, 128
      %420 = vxpose.xlu0.b32.cont [8/16] %v385, 128
      %421 = vxpose.xlu0.b32.cont [9/16] %v390, 128
      %422 = vxpose.xlu0.b32.cont [10/16] %v395, 128
      %423 = vxpose.xlu0.b32.cont [11/16] %v400, 128
      %424 = vxpose.xlu0.b32.cont [12/16] %v405, 128
      %425 = vxpose.xlu0.b32.cont [13/16] %v410, 128
      %426 = vxpose.xlu0.b32.cont [14/16] 0.0, 128
      %427 = vxpose.xlu0.b32.cont [15/16] 0.0, 128
      %428 = vxpose.xlu0.b32.end [16/16] 0.0, 128
      %v429 = vpop.trf.xlu0
      %v430 = vpop.trf.xlu0
      %v431 = vpop.trf.xlu0
      %v432 = vpop.trf.xlu0
      %v433 = vpop.trf.xlu0
      %v434 = vpop.trf.xlu0
      %v435 = vpop.trf.xlu0
      %v436 = vpop.trf.xlu0
      %v437 = vpop.trf.xlu0
      %v438 = vpop.trf.xlu0
      %v439 = vpop.trf.xlu0
      %v440 = vpop.trf.xlu0
      %v441 = vpop.trf.xlu0
      %v442 = vpop.trf.xlu0
      %v443 = vpop.trf.xlu0
      %v444 = vpop.trf.xlu0
      %vm445 = vcmask 818176
      %v446 = vsel %vm445, %v429, -inf
      %447 = vmax.xlane.f32.xlu0 %v446
      %v448 = vpop.xlane.xlu0 %447
      %vm449 = vcmask 815104
      %v450 = vsel %vm449, %v430, -inf
      %451 = vmax.xlane.f32.xlu0 %v450
      %v452 = vpop.xlane.xlu0 %451
      %v453 = vsub.f32 %v429, %v448
      %v454 = vsub.f32 %v430, %v452
      %v455 = vmul.f32 %v453, 1.442695
      %v456 = vpow.pop %v455
      %v457 = vmul.f32 %v454, 1.442695
      %v458 = vpow.pop %v457
      %v459 = vsel %vm445, %v456, 0.0
      %460 = vadd.xlane.f32.xlu0 %v459
      %v461 = vpop.xlane.xlu0 %460
      %v462 = vsel %vm449, %v458, 0.0
      %463 = vadd.xlane.f32.xlu0 %v462
      %v464 = vpop.xlane.xlu0 %463
      %v465 = vrcp.pop %v461
      %v466 = vrcp.pop %v464
      %v467 = vmul.f32 %v456, %v465
      %v468 = vmul.f32 %v458, %v466
      %469 = vst.msk [vmem:[%s216] sm:$0xff] %vm445, %v467
      %470 = vst.msk [vmem:[%s216 + $0x8] sm:$0x1f] %vm449, %v468
      %v472 = vsel %vm445, %v467, 0
      %v475 = vsel %vm445, %v468, 0
      %vm477 = vcmask 1043456
      %v478 = vsel %vm477, %v242, 0
      %480 = vmatprep.subr.mxu0 0.0
      %481 = vmatpush1.msra.mxu0 %v230
      %482 = vmatprep.subr.mxu0 0.0
      %483 = vmatpush1.msra.mxu0 %v231
      %484 = vmatprep.subr.mxu0 0.0
      %485 = vmatpush1.msra.mxu0 %v232
      %486 = vmatprep.subr.mxu0 0.0
      %487 = vmatpush1.msra.mxu0 %v233
      %488 = vmatprep.subr.mxu0 0.0
      %489 = vmatpush1.msra.mxu0 %v234
      %490 = vmatprep.subr.mxu0 0.0
      %491 = vmatpush1.msra.mxu0 %v235
      %492 = vmatprep.subr.mxu0 0.0
      %493 = vmatpush1.msra.mxu0 %v236
      %494 = vmatprep.subr.mxu0 0.0
      %495 = vmatpush1.msra.mxu0 %v237
      %496 = vmatprep.subr.mxu0 0.0
      %497 = vmatpush1.msra.mxu0 %v238
      %498 = vmatprep.subr.mxu0 0.0
      %499 = vmatpush1.msra.mxu0 %v239
      %500 = vmatprep.subr.mxu0 0.0
      %501 = vmatpush1.msra.mxu0 %v240
      %502 = vmatprep.subr.mxu0 0.0
      %503 = vmatpush1.msra.mxu0 %v241
      %504 = vmatprep.subr.mxu0 0.0
      %505 = vmatpush1.msra.mxu0 %v478
      %506 = vmatprep.subr.mxu0 0.0
      %507 = vmatpush1.msra.mxu0 0.0
      %508 = vmatprep.subr.mxu0 0.0
      %509 = vmatpush1.msra.mxu0 0.0
      %510 = vmatprep.subr.mxu0 0.0
      %511 = vmatpush1.msra.mxu0 0.0
      %512 = vmatprep.subr.mxu0 0.0
      %513 = vmatpush1.msra.mxu0 0.0
      %514 = vmatprep.subr.mxu0 0.0
      %515 = vmatpush1.msra.mxu0 0.0
      %516 = vmatprep.subr.mxu0 0.0
      %517 = vmatpush1.msra.mxu0 0.0
      %518 = vmatprep.subr.mxu0 0.0
      %519 = vmatpush1.msra.mxu0 0.0
      %520 = vmatprep.subr.mxu0 0.0
      %521 = vmatpush1.msra.mxu0 0.0
      %522 = vmatprep.subr.mxu0 0.0
      %523 = vmatpush1.msra.mxu0 0.0
      %524 = vmatprep.subr.mxu0 0.0
      %525 = vmatpush1.msra.mxu0 0.0
      %526 = vmatprep.subr.mxu0 0.0
      %527 = vmatpush1.msra.mxu0 0.0
      %528 = vmatprep.subr.mxu0 0.0
      %529 = vmatpush1.msra.mxu0 0.0
      %530 = vmatprep.subr.mxu0 0.0
      %531 = vmatpush1.msra.mxu0 0.0
      %532 = vmatprep.subr.mxu0 0.0
      %533 = vmatpush1.msra.mxu0 0.0
      %534 = vmatprep.subr.mxu0 0.0
      %535 = vmatpush1.msra.mxu0 0.0
      %536 = vmatprep.subr.mxu0 0.0
      %537 = vmatpush1.msra.mxu0 0.0
      %538 = vmatprep.subr.mxu0 0.0
      %539 = vmatpush1.msra.mxu0 0.0
      %540 = vmatprep.subr.mxu0 0.0
      %541 = vmatpush1.msra.mxu0 0.0
      %542 = vmatprep.subr.mxu0 0.0
      %543 = vmatpush1.msra.mxu0 0.0
      %544 = vmatprep.mubr.f32.mxu0 0.0
      %545 = vmatmul.mubr.f32.gmra.mrb[0].mxu0 %v472
      %v546 = vpop.f32.mrb[0].mxu0
      %v547 = vadd.f32 0.0, %v546
      %v548 = vpop.f32.mrb[0].mxu0
      %549 = vmatprep.mubr.f32.mxu0 0.0
      %550 = vmatmul.mubr.f32.gmra.mrb[0].mxu0 %v475
      %v551 = vpop.f32.mrb[0].mxu0
      %v552 = vadd.f32 0.0, %v551
      %v553 = vpop.f32.mrb[0].mxu0
      %554 = vdwg.mxu0
      %555 = vxpose.xlu0.b32.start [1/16] %v547, 128
      %556 = vxpose.xlu0.b32.cont [2/16] %v552, 128
      %557 = vxpose.xlu0.b32.cont [3/16] 0.0, 128
      %558 = vxpose.xlu0.b32.cont [4/16] 0.0, 128
      %559 = vxpose.xlu0.b32.cont [5/16] 0.0, 128
      %560 = vxpose.xlu0.b32.cont [6/16] 0.0, 128
      %561 = vxpose.xlu0.b32.cont [7/16] 0.0, 128
      %562 = vxpose.xlu0.b32.cont [8/16] 0.0, 128
      %563 = vxpose.xlu0.b32.cont [9/16] 0.0, 128
      %564 = vxpose.xlu0.b32.cont [10/16] 0.0, 128
      %565 = vxpose.xlu0.b32.cont [11/16] 0.0, 128
      %566 = vxpose.xlu0.b32.cont [12/16] 0.0, 128
      %567 = vxpose.xlu0.b32.cont [13/16] 0.0, 128
      %568 = vxpose.xlu0.b32.cont [14/16] 0.0, 128
      %569 = vxpose.xlu0.b32.cont [15/16] 0.0, 128
      %570 = vxpose.xlu0.b32.end [16/16] 0.0, 128
      %v571 = vpop.trf.xlu0
      %v572 = vpop.trf.xlu0
      %v573 = vpop.trf.xlu0
      %v574 = vpop.trf.xlu0
      %v575 = vpop.trf.xlu0
      %v576 = vpop.trf.xlu0
      %v577 = vpop.trf.xlu0
      %v578 = vpop.trf.xlu0
      %v579 = vpop.trf.xlu0
      %v580 = vpop.trf.xlu0
      %v581 = vpop.trf.xlu0
      %v582 = vpop.trf.xlu0
      %v583 = vpop.trf.xlu0
      %v584 = vpop.trf.xlu0
      %v585 = vpop.trf.xlu0
      %v586 = vpop.trf.xlu0
      %vm587 = vcmask 105472
      %588 = vst.msk [vmem:[%s225] sm:$0xff] %vm587, %v571
      %589 = vst.msk [vmem:[%s225 + $0x8] sm:$0xff] %vm587, %v572
      %590 = vst.msk [vmem:[%s225 + $0x10] sm:$0xff] %vm587, %v573
      %591 = vst.msk [vmem:[%s225 + $0x18] sm:$0xff] %vm587, %v574
      %s592 = smul.u32 2, %s20
      %p593 = scmp.lt.s32.totalorder %s19, 1
      %s594 = scalar_select %p593, %s19, 1
      %p595 = scmp.lt.s32.totalorder %s592, 1
      %s596 = scalar_select %p595, %s592, 1
      %s597 = smul.addr %s594, 2
      %s598 = sadd.s32 %s596, %s597
      %s599 = smul.addr %s598, 8
      %s600 = scalar_lea.vmem %s2, %s599
      %p601 = scmp.lt.s32.totalorder %s19, 1
      %s602 = scalar_select %p601, %s19, 1
      %p603 = scmp.lt.s32.totalorder %s20, 0
      %s604 = scalar_select %p603, %s20, 0
      %s605 = smul.addr %s602, 4
      %s606 = sadd.s32 %s604, %s605
      %s607 = smul.addr %s606, 8
      %s608 = scalar_lea.vmem %s3, %s607
      // Predicated region
      $region29: #{tpu_custom_call.1} parent=27 // pred_check
        %p609 = pneg %p96
      $region30: #{tpu_custom_call.1} parent=27 // pred_check_branch
        %611 = sbr.rel (%p609) target = $region32
      $region31: #{tpu_custom_call.1} parent=27 // pred_region
        %s612 = smul.u32 2, %s20
      $region32: #{tpu_custom_call.1} parent=27 // pred_fallthru
        _
      // Predicated region
      $region33: #{tpu_custom_call.1} parent=27 // pred_check
        %p613 = pneg %p124
      $region34: #{tpu_custom_call.1} parent=27 // pred_check_branch
        %615 = sbr.rel (%p613) target = $region36
      $region35: #{tpu_custom_call.1} parent=27 // pred_region
        _
      $region36: #{tpu_custom_call.1} parent=27 // pred_fallthru
        _
    $region28: #{tpu_custom_call.1} parent=5 // pred_fallthru
      _
    %p616 = scmp.le.s32.totalorder 2, %s10
    // Predicated region
    $region37: #{tpu_custom_call.1} parent=5 // pred_check
      %p617 = pneg %p616
    $region38: #{tpu_custom_call.1} parent=5 // pred_check_branch
      %619 = sbr.rel (%p617) target = $region40
    $region39: #{tpu_custom_call.1} parent=5 // pred_region
      %s620 = ssub.s32 %s10, 2
      // Predicated region
      $region41: #{tpu_custom_call.1} parent=39 // pred_check
        %p621 = pneg %p102
      $region42: #{tpu_custom_call.1} parent=39 // pred_check_branch
        %623 = sbr.rel (%p621) target = $region44
      $region43: #{tpu_custom_call.1} parent=39 // pred_region
        %s624 = smul.u32 2, %s22
        %p625 = scmp.lt.s32.totalorder %s21, 1
        %s626 = scalar_select %p625, %s21, 1
        %p627 = scmp.lt.s32.totalorder %s624, 1
        %s628 = scalar_select %p627, %s624, 1
        %s629 = smul.addr %s626, 2
        %s630 = sadd.s32 %s628, %s629
        %s631 = smul.addr %s630, 8
        %s632 = scalar_lea.vmem %s2, %s631
      $region44: #{tpu_custom_call.1} parent=39 // pred_fallthru
        _
      // Predicated region
      $region45: #{tpu_custom_call.1} parent=39 // pred_check
        %p633 = pneg %p130
      $region46: #{tpu_custom_call.1} parent=39 // pred_check_branch
        %635 = sbr.rel (%p633) target = $region48
      $region47: #{tpu_custom_call.1} parent=39 // pred_region
        %p636 = scmp.lt.s32.totalorder %s21, 1
        %s637 = scalar_select %p636, %s21, 1
        %p638 = scmp.lt.s32.totalorder %s22, 0
        %s639 = scalar_select %p638, %s22, 0
        %s640 = smul.addr %s637, 4
        %s641 = sadd.s32 %s639, %s640
        %s642 = smul.addr %s641, 8
        %s643 = scalar_lea.vmem %s3, %s642
      $region48: #{tpu_custom_call.1} parent=39 // pred_fallthru
        _
    $region40: #{tpu_custom_call.1} parent=5 // pred_fallthru
      _
  $region6: #{tpu_custom_call.1} parent=0 // loop_footer
    %s14 = sadd.s32 1, %s10
  $region7: #{tpu_custom_call.1} parent=0 // loop_footer_branch
    %9 = sbr.rel target = $region3
  $region8: #{tpu_custom_call.1} parent=0 // loop_exit
    _

</llo_original>
